<compile_context>
chip_gen: v6e
topology: v6e:2x2x1
jax: 0.10.0
libtpu: 0.0.40
codegen_flags: <defaults>
</compile_context>

<pallas_src>
import jax
import jax.numpy as jnp
from jax.experimental import pallas as pl
from jax.experimental.pallas import tpu as pltpu


def _sge_kernel(x_ref, o_ref):
    x = x_ref[...]
    xf = x.astype(jnp.float32)
    cg = xf.shape[1]
    if xf.ndim == 4:                 # Layout A: (gb, Cg, S, 128)
        spatial_axes = (2, 3)
        hw = xf.shape[2] * xf.shape[3]
    else:                            # Layout B: (gb, Cg, HW)
        spatial_axes = (2,)
        hw = xf.shape[2]

    inv_hw = jnp.float32(1.0 / hw)
    # torch.std default is unbiased (divide by HW - 1); degenerate (nan) if
    # HW == 1, matching torch.
    inv_hw_m1 = jnp.float32(1.0 / (hw - 1)) if hw > 1 else jnp.float32(jnp.nan)
    inv_cg = jnp.float32(1.0 / cg)

    # Single-pass spatial stats (results are tiny (gb, Cg, 1[, 1]) tensors).
    s1 = jnp.sum(xf, axis=spatial_axes, keepdims=True)
    s2 = jnp.sum(xf * xf, axis=spatial_axes, keepdims=True)
    mean = s1 * inv_hw
    # unbiased var = (sum(x^2) - HW*mean^2) / (HW - 1); clamp tiny negative
    # rounding so constant inputs give var == 0 exactly like the reference.
    var = jnp.maximum(s2 - mean * s1, 0.0) * inv_hw_m1
    std = jnp.sqrt(var) + 1e-5
    inv_std = 1.0 / std              # exact reciprocal on the tiny stats tensor

    # x_squeeze = mean_c (xf - mean_c) * inv_std_c
    #           = inv_cg * (sum_c xf*inv_std_c - sum_c mean_c*inv_std_c)
    ch = jnp.sum(xf * inv_std, axis=1, keepdims=True)
    corr = jnp.sum(mean * inv_std, axis=1, keepdims=True)
    gate = jax.nn.sigmoid((ch - corr) * inv_cg)

    # Gate multiply in the input's native dtype (keeps bf16 bulk work in bf16
    # on v6e/v7x; exact no-op for f32).
    o_ref[...] = (x * gate.astype(x.dtype)).astype(o_ref.dtype)


def _chip_config():
    """Per-generation knobs; conservative (v7x-like) defaults if unknown."""
    try:
        kind = jax.devices()[0].device_kind.lower()
    except Exception:
        kind = ""
    if "v5" in kind or "v6" in kind:
        # Single TensorCore per chip, 128 MiB physical VMEM.
        return {"vmem_budget": 100 << 20, "target_block": 16 << 20, "cores": 1}
    # v7x (and unknown): 64 MiB physical VMEM, 2 TensorCores share the grid.
    return {"vmem_budget": 44 << 20, "target_block": 8 << 20, "cores": 2}


def spatial_group_enhance(x, groups):
    N, C, H, W = x.shape
    assert C % groups == 0, "C must be divisible by groups"
    Cg = C // groups
    HW = H * W
    NG = N * groups
    itemsize = jnp.dtype(x.dtype).itemsize
    sub = max(8, 32 // itemsize)          # sublane packing: f32 -> 8, bf16 -> 16

    # ---- layout selection --------------------------------------------------
    if HW % 128 == 0 and (HW // 128) % sub == 0:
        # Layout A: lane-dense spatial fold with zero tile padding.
        S = HW // 128
        xr = x.reshape(NG, Cg, S, 128)
        block_tail = (Cg, S, 128)
        index_map = lambda i: (i, 0, 0, 0)
        padded_group_elems = Cg * S * 128
    else:
        # Layout B: (Cg, HW) slab; sublane axis = Cg, lane axis = HW.
        xr = x.reshape(NG, Cg, HW)
        block_tail = (Cg, HW)
        index_map = lambda i: (i, 0, 0)
        padded_group_elems = (pl.cdiv(Cg, sub) * sub) * (pl.cdiv(HW, 128) * 128)

    # ---- group batching (gb groups per grid step) ---------------------------
    cfg = _chip_config()
    group_io_bytes = padded_group_elems * itemsize
    # Honest VMEM model: double-buffered in + out blocks, plus ~3 full-block
    # f32 temporaries (cast + elementwise/reduction transients).
    group_vmem_bytes = 4 * group_io_bytes + 3 * padded_group_elems * 4

    gb_fit = max(1, cfg["vmem_budget"] // group_vmem_bytes)
    gb_tgt = max(1, cfg["target_block"] // max(group_io_bytes, 1))
    gb = int(min(NG, gb_fit, gb_tgt))
    if cfg["cores"] > 1 and NG >= cfg["cores"]:
        gb = min(gb, max(1, NG // cfg["cores"]))   # >= 1 block per TensorCore
    while NG % gb != 0:                             # no ragged / masked tail block
        gb -= 1
    if cfg["cores"] > 1:
        # Prefer an even number of grid steps so both TensorCores get equal work.
        steps = NG // gb
        if steps > 1 and steps % 2 != 0:
            g2 = gb - 1
            while g2 >= 1 and not (NG % g2 == 0 and (NG // g2) % 2 == 0):
                g2 -= 1
            if g2 >= 1:
                gb = g2
    # TODO(synk): if a single group ever exceeds the VMEM budget (huge Cg*H*W),
    # add a spatial-chunk grid axis ('arbitrary') with scratch sum/sumsq
    # accumulators finalized under pl.when, instead of inflating vmem_limit.

    vmem_limit = int(max(32 << 20,
                         min(gb * group_vmem_bytes + (4 << 20), 128 << 20)))

    cost = pl.CostEstimate(
        flops=8 * N * C * H * W,
        transcendentals=NG * HW + 2 * NG * Cg,      # sigmoid + sqrt/recip
        bytes_accessed=2 * N * C * H * W * itemsize,
    )

    out = pl.pallas_call(
        _sge_kernel,
        out_shape=jax.ShapeDtypeStruct(xr.shape, x.dtype),
        grid=(NG // gb,),
        in_specs=[pl.BlockSpec((gb,) + block_tail, index_map)],
        out_specs=pl.BlockSpec((gb,) + block_tail, index_map),
        compiler_params=pltpu.CompilerParams(
            dimension_semantics=("parallel",),
            vmem_limit_bytes=vmem_limit,
        ),
        cost_estimate=cost,
    )(xr)

    return out.reshape(N, C, H, W)


def _reference(x, groups):
    # Pure-JAX reference mirroring the PyTorch forward (two-pass variance).
    N, C, H, W = x.shape
    Cg = C // groups
    xg = x.reshape(N, groups, Cg, H, W).astype(jnp.float32)
    mean = jnp.mean(xg, axis=(3, 4), keepdims=True)
    var = jnp.sum((xg - mean) ** 2, axis=(3, 4), keepdims=True) / (H * W - 1)
    std = jnp.sqrt(var) + 1e-5
    x_scaled = (xg - mean) / std
    x_squeeze = jnp.mean(x_scaled, axis=2, keepdims=True)
    x_excite = jax.nn.sigmoid(x_squeeze)
    out = xg * x_excite
    return out.reshape(N, C, H, W).astype(x.dtype)


if __name__ == "__main__":
    key = jax.random.PRNGKey(0)
    k1, k2 = jax.random.split(key)

    # Case 1 (slab fallback path): HW = 256 -> S = 2 < 8, uses (Cg, HW) layout.
    groups1 = 4
    x1 = jax.random.normal(k1, (2, 8, 16, 16), dtype=jnp.float32)
    y1 = jax.block_until_ready(spatial_group_enhance(x1, groups1))
    r1 = _reference(x1, groups1)
    assert y1.shape == x1.shape and y1.dtype == x1.dtype
    assert jnp.allclose(y1, r1, atol=1e-5, rtol=1e-5)

    # Case 2 (lane-dense fold path): HW = 1024 -> S = 8, uses (Cg, S, 128) layout.
    groups2 = 2
    x2 = jax.random.normal(k2, (1, 8, 32, 32), dtype=jnp.float32)
    y2 = jax.block_until_ready(spatial_group_enhance(x2, groups2))
    r2 = _reference(x2, groups2)
    assert y2.shape == x2.shape and y2.dtype == x2.dtype
    assert jnp.allclose(y2, r2, atol=1e-5, rtol=1e-5)

    print("KERNEL_OK")
</pallas_src>

<mosaic_0001>
module attributes {stable_mosaic.version = 11 : i64} {
  func.func @_sge_kernel(%arg0: i32, %arg1: memref<4x2x256xf32, #tpu.memory_space<vmem>>, %arg2: memref<4x2x256xf32, #tpu.memory_space<vmem>>) attributes {dimension_semantics = [#tpu.dimension_semantics<parallel>], iteration_bounds = array<i64: 2>, scalar_prefetch = 0 : i64, scratch_operands = 0 : i64, tpu.core_type = #tpu.core_type<tc>, window_params = [{transform_indices = @transform_0, window_bounds = array<i64: 4, 2, 256>}, {transform_indices = @transform_1, window_bounds = array<i64: 4, 2, 256>}]} {
    %c0 = arith.constant 0 : index
    %c0_0 = arith.constant 0 : index
    %c0_1 = arith.constant 0 : index
    %0 = vector.load %arg1[%c0, %c0_0, %c0_1] : memref<4x2x256xf32, #tpu.memory_space<vmem>>, vector<4x2x256xf32>
    %cst = arith.constant dense<0.000000e+00> : vector<4x2xf32>
    %1 = vector.multi_reduction <add>, %0, %cst [2] : vector<4x2x256xf32> to vector<4x2xf32>
    %2 = vector.shape_cast %1 : vector<4x2xf32> to vector<4x2x1xf32>
    %3 = arith.mulf %0, %0 : vector<4x2x256xf32>
    %cst_2 = arith.constant dense<0.000000e+00> : vector<4x2xf32>
    %4 = vector.multi_reduction <add>, %3, %cst_2 [2] : vector<4x2x256xf32> to vector<4x2xf32>
    %5 = vector.shape_cast %4 : vector<4x2xf32> to vector<4x2x1xf32>
    %cst_3 = arith.constant 3.906250e-03 : f32
    %6 = vector.broadcast %cst_3 : f32 to vector<4x2x1xf32>
    %7 = arith.mulf %2, %6 : vector<4x2x1xf32>
    %8 = arith.mulf %7, %2 : vector<4x2x1xf32>
    %9 = arith.subf %5, %8 : vector<4x2x1xf32>
    %cst_4 = arith.constant 0.000000e+00 : f32
    %10 = vector.broadcast %cst_4 : f32 to vector<4x2x1xf32>
    %11 = arith.maximumf %9, %10 : vector<4x2x1xf32>
    %cst_5 = arith.constant 0.00392156886 : f32
    %12 = vector.broadcast %cst_5 : f32 to vector<4x2x1xf32>
    %13 = arith.mulf %11, %12 : vector<4x2x1xf32>
    %14 = math.sqrt %13 : vector<4x2x1xf32>
    %cst_6 = arith.constant 9.99999974E-6 : f32
    %15 = vector.broadcast %cst_6 : f32 to vector<4x2x1xf32>
    %16 = arith.addf %14, %15 : vector<4x2x1xf32>
    %cst_7 = arith.constant 1.000000e+00 : f32
    %17 = vector.broadcast %cst_7 : f32 to vector<4x2x1xf32>
    %18 = arith.divf %17, %16 : vector<4x2x1xf32>
    %19 = vector.broadcast %18 : vector<4x2x1xf32> to vector<4x2x256xf32>
    %20 = arith.mulf %0, %19 : vector<4x2x256xf32>
    %cst_8 = arith.constant dense<0.000000e+00> : vector<4x256xf32>
    %21 = vector.multi_reduction <add>, %20, %cst_8 [1] : vector<4x2x256xf32> to vector<4x256xf32>
    %22 = vector.shape_cast %21 : vector<4x256xf32> to vector<4x1x256xf32>
    %23 = arith.mulf %7, %18 : vector<4x2x1xf32>
    %cst_9 = arith.constant dense<0.000000e+00> : vector<4x1xf32>
    %24 = vector.multi_reduction <add>, %23, %cst_9 [1] : vector<4x2x1xf32> to vector<4x1xf32>
    %25 = vector.shape_cast %24 : vector<4x1xf32> to vector<4x1x1xf32>
    %26 = vector.broadcast %25 : vector<4x1x1xf32> to vector<4x1x256xf32>
    %27 = arith.subf %22, %26 : vector<4x1x256xf32>
    %cst_10 = arith.constant 5.000000e-01 : f32
    %28 = vector.broadcast %cst_10 : f32 to vector<4x1x256xf32>
    %29 = arith.mulf %27, %28 : vector<4x1x256xf32>
    %30 = arith.negf %29 : vector<4x1x256xf32>
    %31 = math.exp %30 : vector<4x1x256xf32>
    %cst_11 = arith.constant 1.000000e+00 : f32
    %32 = vector.broadcast %cst_11 : f32 to vector<4x1x256xf32>
    %33 = arith.addf %32, %31 : vector<4x1x256xf32>
    %34 = arith.divf %32, %33 : vector<4x1x256xf32>
    %35 = vector.broadcast %34 : vector<4x1x256xf32> to vector<4x2x256xf32>
    %36 = arith.mulf %0, %35 : vector<4x2x256xf32>
    %c0_12 = arith.constant 0 : index
    %c0_13 = arith.constant 0 : index
    %c0_14 = arith.constant 0 : index
    %37 = vector.load %arg2[%c0_12, %c0_13, %c0_14] : memref<4x2x256xf32, #tpu.memory_space<vmem>>, vector<4x2x256xf32>
    tpu.vector_store %arg2[%c0_12, %c0_13, %c0_14], %36 {strides = array<i32>} : memref<4x2x256xf32, #tpu.memory_space<vmem>>, vector<4x2x256xf32>,
    return
  }
  func.func @transform_0(%arg0: i32) -> (i32, i32, i32) {
    %c0_i32 = arith.constant 0 : i32
    %c0_i32_0 = arith.constant 0 : i32
    %c0_i32_1 = arith.constant 0 : i32
    return %arg0, %c0_i32, %c0_i32_0 : i32, i32, i32
  }
  func.func @transform_1(%arg0: i32) -> (i32, i32, i32) {
    %c0_i32 = arith.constant 0 : i32
    %c0_i32_0 = arith.constant 0 : i32
    %c0_i32_1 = arith.constant 0 : i32
    return %arg0, %c0_i32, %c0_i32_0 : i32, i32, i32
  }
}

</mosaic_0001>

<llo_original>
// kernel: tpu_custom_call.1
$region0: #{tpu_custom_call.1}
  #allocation0 [shape = 'u32[]', space=smem, size = 0x4, offset = 0x4, fixed_abs, tag = 'smem constant byte address 0x4 - core index']
  #allocation1 [shape = 'u32[144,128]{1,0:T(1,128)}', space=vmem, size = 0x12000, scoped, tag = 'internal scratch']
  %s0 = inlined_call_operand.hbm [shape: f32[8,2,256], index: 0, kind: input, shape index: {}]
  %s1 = inlined_call_operand.hbm [shape: f32[8,2,256], index: 1, kind: output, shape index: {}]
  %s2 = sld [smem:[#allocation0]]
  $region41: #{tpu_custom_call.1} parent=0
    _
  %s4 = ssub.s32 1, %s2
  %s5 = scalar_select 0, %s4, %s2
  $region1: #{tpu_custom_call.1} parent=0
    #allocation2 [shape = 'u8[16384]{0}', space=vmem, size = 0x4000, scoped, tag = 'input window, operand 0']
    #allocation3 [shape = 's32[2]{0}', space=sflag, size = 0x8, scoped, tag = 'scoped memory for tpu_custom_call.1']
    #allocation4 [shape = 's32[2]{0}', space=sflag, size = 0x8, scoped, tag = 'scoped memory for tpu_custom_call.1']
    #allocation5 [shape = 'u8[16384]{0}', space=vmem, size = 0x4000, scoped, tag = 'output window, operand 0']
    %6 = vsyncpa [#allocation3], 0
    %s7 = scalar_lea.sflag [#allocation3], 1
    %8 = vsyncpa %s7, 0
    %9 = vsyncpa [#allocation4], 0
    %s10 = scalar_lea.sflag [#allocation4], 1
    %11 = vsyncpa %s10, 0
    loop: start=0, step=1, limit=4
    $region2: #{tpu_custom_call.1} parent=1 // loop_pre_header
      _
    $region3: #{tpu_custom_call.1} parent=1 // loop_header
      %s13 = sphi 0, %s17
      %p14 = scmp.ge.s32.totalorder %s13, 4
      %s23 = sphi 0, %s25
      %s26 = sphi 0, %s23
      %s27 = sphi 0, %s26
      %s43 = sphi 0, %s27
      %s49 = sphi 0, %s51
      %s52 = sphi 0, %s49
      %s53 = sphi 0, %s52
      %s69 = sphi 0, %s53
    $region4: #{tpu_custom_call.1} parent=1 // loop_header_branch
      %16 = sbr.rel (%p14) target = $region8
    $region5: #{tpu_custom_call.1} parent=1 // loop_body
      %s18 = ssub.s32 %s13, 1
      %s19 = ssub.s32 %s13, 2
      %s20 = sadd.s32 %s13, 1
      %s21 = ssub.s32 %s13, %s20
      %p22 = scmp.eq.s32.totalorder %s21, 0
      %s24 = sadd.s32 %s23, 1
      %s25 = scalar_select %p22, %s23, %s24
      %p28 = pneg %p22
      %p29 = scmp.eq.s32.totalorder %s13, 1
      %p30 = por %p28, %p29
      %p31 = scmp.ne.s32.totalorder %s23, %s26
      %p32 = scmp.eq.s32.totalorder %s13, 0
      %p33 = por %p31, %p32
      %p34 = scmp.ne.s32.totalorder %s23, %s26
      %p35 = scmp.eq.s32.totalorder %s18, 1
      %p36 = por %p34, %p35
      %p37 = scmp.ne.s32.totalorder %s26, %s27
      %p38 = scmp.eq.s32.totalorder %s18, 0
      %p39 = por %p37, %p38
      %p40 = scmp.ne.s32.totalorder %s26, %s27
      %p41 = scmp.eq.s32.totalorder %s19, 1
      %p42 = por %p40, %p41
      %p44 = scmp.ne.s32.totalorder %s27, %s43
      %p45 = scmp.eq.s32.totalorder %s19, 0
      %p46 = por %p44, %p45
      %s47 = ssub.s32 %s13, %s20
      %p48 = scmp.eq.s32.totalorder %s47, 0
      %s50 = sadd.s32 %s49, 1
      %s51 = scalar_select %p48, %s49, %s50
      %p54 = pneg %p48
      %p55 = scmp.eq.s32.totalorder %s13, 1
      %p56 = por %p54, %p55
      %p57 = scmp.ne.s32.totalorder %s49, %s52
      %p58 = scmp.eq.s32.totalorder %s13, 0
      %p59 = por %p57, %p58
      %p60 = scmp.ne.s32.totalorder %s49, %s52
      %p61 = scmp.eq.s32.totalorder %s18, 1
      %p62 = por %p60, %p61
      %p63 = scmp.ne.s32.totalorder %s52, %s53
      %p64 = scmp.eq.s32.totalorder %s18, 0
      %p65 = por %p63, %p64
      %p66 = scmp.ne.s32.totalorder %s52, %s53
      %p67 = scmp.eq.s32.totalorder %s19, 1
      %p68 = por %p66, %p67
      %p70 = scmp.ne.s32.totalorder %s53, %s69
      %p71 = scmp.eq.s32.totalorder %s19, 0
      %p72 = por %p70, %p71
      %p73 = scmp.le.s32.totalorder 1, %s13
      %p74 = scmp.lt.s32.totalorder %s13, 3
      %p75 = pnand %p73, %p74
      %p76 = pneg %p75
      // Predicated region
      $region9: #{tpu_custom_call.1} parent=5 // pred_check
        _
      $region10: #{tpu_custom_call.1} parent=5 // pred_check_branch
        %78 = sbr.rel (%p75) target = $region12
      $region11: #{tpu_custom_call.1} parent=5 // pred_region
        %s79 = ssub.s32 %s13, 1
      $region12: #{tpu_custom_call.1} parent=5 // pred_fallthru
        _
      %p80 = scmp.lt.s32.totalorder %s13, 2
      // Predicated region
      $region13: #{tpu_custom_call.1} parent=5 // pred_check
        %p81 = pneg %p80
      $region14: #{tpu_custom_call.1} parent=5 // pred_check_branch
        %83 = sbr.rel (%p81) target = $region16
      $region15: #{tpu_custom_call.1} parent=5 // pred_region
        // Predicated region
        $region17: #{tpu_custom_call.1} parent=15 // pred_check
          %p84 = pneg %p33
        $region18: #{tpu_custom_call.1} parent=15 // pred_check_branch
          %86 = sbr.rel (%p84) target = $region20
        $region19: #{tpu_custom_call.1} parent=15 // pred_region
          %s87 = sand.u32 %s23, 1
          %s88 = scalar_lea.sflag [#allocation3], %s87
          %s89 = sand.u32 %s23, 1
          %s90 = smul.addr %s89, 16
          %s91 = scalar_lea.vmem [#allocation2], %s90
          %s92 = smul.u32 4, %s13
          %s94 = ssub.s32 256, 256
          %95 = vsyncadd %s88, %s94
          %s96 = smul.addr %s92, 2
          %s97 = smul.addr %s96, 32
          %s98 = scalar_lea.hbm %s0, %s97
          %s99 = sshll.u32 %s91, 4
          %s100 = int_to_ptr.vmem [resolvable:$true] %s99
          %105 = dma.hbm_to_vmem [thread:$0]  %s98, 256, %s100, %s88, 64, 64, 4
        $region20: #{tpu_custom_call.1} parent=15 // pred_fallthru
          _
      $region16: #{tpu_custom_call.1} parent=5 // pred_fallthru
        _
      %p106 = scmp.le.s32.totalorder 1, %s13
      %p107 = scmp.lt.s32.totalorder %s13, 3
      %p108 = pnand %p106, %p107
      %p109 = pneg %p108
      // Predicated region
      $region21: #{tpu_custom_call.1} parent=5 // pred_check
        _
      $region22: #{tpu_custom_call.1} parent=5 // pred_check_branch
        %111 = sbr.rel (%p108) target = $region24
      $region23: #{tpu_custom_call.1} parent=5 // pred_region
        %s112 = ssub.s32 %s13, 1
        %s113 = sand.u32 %s26, 1
        %s114 = scalar_lea.sflag [#allocation3], %s113
        %s115 = sand.u32 %s26, 1
        %s116 = smul.addr %s115, 16
        %s117 = scalar_lea.vmem [#allocation2], %s116
        // Predicated region
        $region25: #{tpu_custom_call.1} parent=23 // pred_check
          %p118 = pneg %p39
        $region26: #{tpu_custom_call.1} parent=23 // pred_check_branch
          %120 = sbr.rel (%p118) target = $region28
        $region27: #{tpu_custom_call.1} parent=23 // pred_region
          %121 = dma.done %s114, 256
        $region28: #{tpu_custom_call.1} parent=23 // pred_fallthru
          _
        %s122 = sand.u32 %s26, 1
        %s123 = scalar_lea.sflag [#allocation3], %s122
        %s124 = sand.u32 %s26, 1
        %s125 = smul.addr %s124, 16
        %s126 = scalar_lea.vmem [#allocation2], %s125
        %p127 = pneg %p39
        %p128 = pneg %p36
        %p129 = pneg %p65
        %p130 = pneg %p62
        %s131 = sand.u32 %s52, 1
        %s132 = scalar_lea.sflag [#allocation4], %s131
        %s133 = sand.u32 %s52, 1
        %s134 = smul.addr %s133, 16
        %s135 = scalar_lea.vmem [#allocation5], %s134
        %s136 = smul.u32 4, %s18
        %s137 = smul.u32 4, %s18
        %v138 = vld [vmem:[%s117] sm:$0xf]
        %v139 = vld [vmem:[%s117 + $0x4] sm:$0xf]
        %v140 = vld [vmem:[%s117 + $0x8] sm:$0xf]
        %v141 = vld [vmem:[%s117 + $0xc] sm:$0xf]
        %v147 = vunpack.c.l.s4 1983009808
        %v148 = vunpack.c.0.s8 %v147
        %v149 = vlaneseq
        %v150 = vshrl.u32 %v149, 7
        %v151 = vsub.s32 %v148, %v150
        %v152 = vrot.slane %v138, %v151
        %v153 = vcombine.high %v152, %v152
        %v155 = vunpack.c.l.s4 1983009808
        %v156 = vunpack.c.0.s8 %v155
        %v157 = vlaneseq
        %v158 = vshrl.u32 %v157, 7
        %v159 = vsub.s32 %v156, %v158
        %v160 = vrot.slane %v139, %v159
        %v161 = vcombine.high %v160, %v160
        %v163 = vunpack.c.l.s4 1983009808
        %v164 = vunpack.c.0.s8 %v163
        %v165 = vlaneseq
        %v166 = vshrl.u32 %v165, 7
        %v167 = vsub.s32 %v164, %v166
        %v168 = vrot.slane %v140, %v167
        %v169 = vcombine.high %v168, %v168
        %v171 = vunpack.c.l.s4 1983009808
        %v172 = vunpack.c.0.s8 %v171
        %v173 = vlaneseq
        %v174 = vshrl.u32 %v173, 7
        %v175 = vsub.s32 %v172, %v174
        %v176 = vrot.slane %v141, %v175
        %v177 = vcombine.high %v176, %v176
        %vm186 = vcmask 1041408
        %v187 = vsel %vm186, %v152, 0.0
        %v188 = vsel %vm186, %v153, 0.0
        %v189 = vadd.f32 %v187, %v188
        %190 = vadd.xlane.f32.xlu0 %v189
        %v191 = vpop.xlane.xlu0 %190
        %v192 = vsel %vm186, %v160, 0.0
        %v193 = vsel %vm186, %v161, 0.0
        %v194 = vadd.f32 %v192, %v193
        %195 = vadd.xlane.f32.xlu0 %v194
        %v196 = vpop.xlane.xlu0 %195
        %v197 = vsel %vm186, %v168, 0.0
        %v198 = vsel %vm186, %v169, 0.0
        %v199 = vadd.f32 %v197, %v198
        %200 = vadd.xlane.f32.xlu0 %v199
        %v201 = vpop.xlane.xlu0 %200
        %v202 = vsel %vm186, %v176, 0.0
        %v203 = vsel %vm186, %v177, 0.0
        %v204 = vadd.f32 %v202, %v203
        %205 = vadd.xlane.f32.xlu0 %v204
        %v206 = vpop.xlane.xlu0 %205
        %v207 = vmul.f32 %v138, %v138
        %v208 = vmul.f32 %v139, %v139
        %v209 = vmul.f32 %v140, %v140
        %v210 = vmul.f32 %v141, %v141
        %v216 = vunpack.c.l.s4 1983009808
        %v217 = vunpack.c.0.s8 %v216
        %v218 = vlaneseq
        %v219 = vshrl.u32 %v218, 7
        %v220 = vsub.s32 %v217, %v219
        %v221 = vrot.slane %v207, %v220
        %v222 = vcombine.high %v221, %v221
        %v224 = vunpack.c.l.s4 1983009808
        %v225 = vunpack.c.0.s8 %v224
        %v226 = vlaneseq
        %v227 = vshrl.u32 %v226, 7
        %v228 = vsub.s32 %v225, %v227
        %v229 = vrot.slane %v208, %v228
        %v230 = vcombine.high %v229, %v229
        %v232 = vunpack.c.l.s4 1983009808
        %v233 = vunpack.c.0.s8 %v232
        %v234 = vlaneseq
        %v235 = vshrl.u32 %v234, 7
        %v236 = vsub.s32 %v233, %v235
        %v237 = vrot.slane %v209, %v236
        %v238 = vcombine.high %v237, %v237
        %v240 = vunpack.c.l.s4 1983009808
        %v241 = vunpack.c.0.s8 %v240
        %v242 = vlaneseq
        %v243 = vshrl.u32 %v242, 7
        %v244 = vsub.s32 %v241, %v243
        %v245 = vrot.slane %v210, %v244
        %v246 = vcombine.high %v245, %v245
        %v255 = vsel %vm186, %v221, 0.0
        %v256 = vsel %vm186, %v222, 0.0
        %v257 = vadd.f32 %v255, %v256
        %258 = vadd.xlane.f32.xlu0 %v257
        %v259 = vpop.xlane.xlu0 %258
        %v260 = vsel %vm186, %v229, 0.0
        %v261 = vsel %vm186, %v230, 0.0
        %v262 = vadd.f32 %v260, %v261
        %263 = vadd.xlane.f32.xlu0 %v262
        %v264 = vpop.xlane.xlu0 %263
        %v265 = vsel %vm186, %v237, 0.0
        %v266 = vsel %vm186, %v238, 0.0
        %v267 = vadd.f32 %v265, %v266
        %268 = vadd.xlane.f32.xlu0 %v267
        %v269 = vpop.xlane.xlu0 %268
        %v270 = vsel %vm186, %v245, 0.0
        %v271 = vsel %vm186, %v246, 0.0
        %v272 = vadd.f32 %v270, %v271
        %273 = vadd.xlane.f32.xlu0 %v272
        %v274 = vpop.xlane.xlu0 %273
        %v275 = vmul.f32 %v191, 0.00390625
        %v276 = vmul.f32 %v196, 0.00390625
        %v277 = vmul.f32 %v201, 0.00390625
        %v278 = vmul.f32 %v206, 0.00390625
        %v279 = vmul.f32 %v275, %v191
        %v280 = vmul.f32 %v276, %v196
        %v281 = vmul.f32 %v277, %v201
        %v282 = vmul.f32 %v278, %v206
        %v283 = vsub.f32 %v259, %v279
        %v284 = vsub.f32 %v264, %v280
        %v285 = vsub.f32 %v269, %v281
        %v286 = vsub.f32 %v274, %v282
        %v287 = vmax.f32 %v283, 0.0
        %v288 = vmax.f32 %v284, 0.0
        %v289 = vmax.f32 %v285, 0.0
        %v290 = vmax.f32 %v286, 0.0
        %v291 = vmul.f32 %v287, 0.003921569
        %v292 = vmul.f32 %v288, 0.003921569
        %v293 = vmul.f32 %v289, 0.003921569
        %v294 = vmul.f32 %v290, 0.003921569
        %v295 = vrsqrt.pop %v291
        %v296 = vmul.f32 %v291, %v295
        %vm297 = vcmp.eq.f32.partialorder %v291, inf
        %v298 = vsel %vm297, %v291, %v296
        %vm299 = vcmp.eq.f32.partialorder %v291, 0.0
        %v300 = vand.u32 %v291, 2147483648
        %v301 = vsel %vm299, %v300, %v298
        %v302 = vrsqrt.pop %v292
        %v303 = vmul.f32 %v292, %v302
        %vm304 = vcmp.eq.f32.partialorder %v292, inf
        %v305 = vsel %vm304, %v292, %v303
        %vm306 = vcmp.eq.f32.partialorder %v292, 0.0
        %v307 = vand.u32 %v292, 2147483648
        %v308 = vsel %vm306, %v307, %v305
        %v309 = vrsqrt.pop %v293
        %v310 = vmul.f32 %v293, %v309
        %vm311 = vcmp.eq.f32.partialorder %v293, inf
        %v312 = vsel %vm311, %v293, %v310
        %vm313 = vcmp.eq.f32.partialorder %v293, 0.0
        %v314 = vand.u32 %v293, 2147483648
        %v315 = vsel %vm313, %v314, %v312
        %v316 = vrsqrt.pop %v294
        %v317 = vmul.f32 %v294, %v316
        %vm318 = vcmp.eq.f32.partialorder %v294, inf
        %v319 = vsel %vm318, %v294, %v317
        %vm320 = vcmp.eq.f32.partialorder %v294, 0.0
        %v321 = vand.u32 %v294, 2147483648
        %v322 = vsel %vm320, %v321, %v319
        %v323 = vadd.f32 %v301, 1e-05
        %v324 = vadd.f32 %v308, 1e-05
        %v325 = vadd.f32 %v315, 1e-05
        %v326 = vadd.f32 %v322, 1e-05
        %v327 = vrcp.pop %v323
        %v328 = vmul.f32 1.0, %v327
        %v329 = vrcp.pop %v324
        %v330 = vmul.f32 1.0, %v329
        %v331 = vrcp.pop %v325
        %v332 = vmul.f32 1.0, %v331
        %v333 = vrcp.pop %v326
        %v334 = vmul.f32 1.0, %v333
        %v340 = vunpack.c.l.s4 269488144
        %v341 = vunpack.c.0.s8 %v340
        %v342 = vlaneseq
        %v343 = vshrl.u32 %v342, 7
        %v344 = vsub.s32 %v341, %v343
        %v345 = vrot.slane %v328, %v344
        %v347 = vunpack.c.l.s4 269488144
        %v348 = vunpack.c.0.s8 %v347
        %v349 = vlaneseq
        %v350 = vshrl.u32 %v349, 7
        %v351 = vsub.s32 %v348, %v350
        %v352 = vrot.slane %v330, %v351
        %v354 = vunpack.c.l.s4 269488144
        %v355 = vunpack.c.0.s8 %v354
        %v356 = vlaneseq
        %v357 = vshrl.u32 %v356, 7
        %v358 = vsub.s32 %v355, %v357
        %v359 = vrot.slane %v332, %v358
        %v361 = vunpack.c.l.s4 269488144
        %v362 = vunpack.c.0.s8 %v361
        %v363 = vlaneseq
        %v364 = vshrl.u32 %v363, 7
        %v365 = vsub.s32 %v362, %v364
        %v366 = vrot.slane %v334, %v365
        %v371 = vmul.f32 %v138, %v345
        %v372 = vmul.f32 %v139, %v352
        %v373 = vmul.f32 %v140, %v359
        %v374 = vmul.f32 %v141, %v366
        %v380 = vunpack.c.l.s4 1983009808
        %v381 = vunpack.c.0.s8 %v380
        %v382 = vlaneseq
        %v383 = vshrl.u32 %v382, 7
        %v384 = vsub.s32 %v381, %v383
        %v385 = vrot.slane %v371, %v384
        %v386 = vcombine.high %v385, %v385
        %v388 = vunpack.c.l.s4 1983009808
        %v389 = vunpack.c.0.s8 %v388
        %v390 = vlaneseq
        %v391 = vshrl.u32 %v390, 7
        %v392 = vsub.s32 %v389, %v391
        %v393 = vrot.slane %v372, %v392
        %v394 = vcombine.high %v393, %v393
        %v396 = vunpack.c.l.s4 1983009808
        %v397 = vunpack.c.0.s8 %v396
        %v398 = vlaneseq
        %v399 = vshrl.u32 %v398, 7
        %v400 = vsub.s32 %v397, %v399
        %v401 = vrot.slane %v373, %v400
        %v402 = vcombine.high %v401, %v401
        %v404 = vunpack.c.l.s4 1983009808
        %v405 = vunpack.c.0.s8 %v404
        %v406 = vlaneseq
        %v407 = vshrl.u32 %v406, 7
        %v408 = vsub.s32 %v405, %v407
        %v409 = vrot.slane %v374, %v408
        %v410 = vcombine.high %v409, %v409
        %v419 = vsel %vm186, %v385, 0.0
        %v420 = vrot.slane %v419, 4
        %v421 = vadd.f32 %v419, %v420
        %v422 = vrot.slane %v421, 2
        %v423 = vadd.f32 %v421, %v422
        %v424 = vrot.slane %v423, 1
        %v425 = vadd.f32 %v423, %v424
        %v426 = vsel %vm186, %v386, 0.0
        %v427 = vrot.slane %v426, 4
        %v428 = vadd.f32 %v426, %v427
        %v429 = vrot.slane %v428, 2
        %v430 = vadd.f32 %v428, %v429
        %v431 = vrot.slane %v430, 1
        %v432 = vadd.f32 %v430, %v431
        %v433 = vsel %vm186, %v393, 0.0
        %v434 = vrot.slane %v433, 4
        %v435 = vadd.f32 %v433, %v434
        %v436 = vrot.slane %v435, 2
        %v437 = vadd.f32 %v435, %v436
        %v438 = vrot.slane %v437, 1
        %v439 = vadd.f32 %v437, %v438
        %v440 = vsel %vm186, %v394, 0.0
        %v441 = vrot.slane %v440, 4
        %v442 = vadd.f32 %v440, %v441
        %v443 = vrot.slane %v442, 2
        %v444 = vadd.f32 %v442, %v443
        %v445 = vrot.slane %v444, 1
        %v446 = vadd.f32 %v444, %v445
        %v447 = vsel %vm186, %v401, 0.0
        %v448 = vrot.slane %v447, 4
        %v449 = vadd.f32 %v447, %v448
        %v450 = vrot.slane %v449, 2
        %v451 = vadd.f32 %v449, %v450
        %v452 = vrot.slane %v451, 1
        %v453 = vadd.f32 %v451, %v452
        %v454 = vsel %vm186, %v402, 0.0
        %v455 = vrot.slane %v454, 4
        %v456 = vadd.f32 %v454, %v455
        %v457 = vrot.slane %v456, 2
        %v458 = vadd.f32 %v456, %v457
        %v459 = vrot.slane %v458, 1
        %v460 = vadd.f32 %v458, %v459
        %v461 = vsel %vm186, %v409, 0.0
        %v462 = vrot.slane %v461, 4
        %v463 = vadd.f32 %v461, %v462
        %v464 = vrot.slane %v463, 2
        %v465 = vadd.f32 %v463, %v464
        %v466 = vrot.slane %v465, 1
        %v467 = vadd.f32 %v465, %v466
        %v468 = vsel %vm186, %v410, 0.0
        %v469 = vrot.slane %v468, 4
        %v470 = vadd.f32 %v468, %v469
        %v471 = vrot.slane %v470, 2
        %v472 = vadd.f32 %v470, %v471
        %v473 = vrot.slane %v472, 1
        %v474 = vadd.f32 %v472, %v473
        %v475 = vmul.f32 %v275, %v328
        %v476 = vmul.f32 %v276, %v330
        %v477 = vmul.f32 %v277, %v332
        %v478 = vmul.f32 %v278, %v334
        %v479 = vsel %vm186, %v475, 0.0
        %v480 = vrot.slane %v479, 4
        %v481 = vadd.f32 %v479, %v480
        %v482 = vrot.slane %v481, 2
        %v483 = vadd.f32 %v481, %v482
        %v484 = vrot.slane %v483, 1
        %v485 = vadd.f32 %v483, %v484
        %v486 = vsel %vm186, %v476, 0.0
        %v487 = vrot.slane %v486, 4
        %v488 = vadd.f32 %v486, %v487
        %v489 = vrot.slane %v488, 2
        %v490 = vadd.f32 %v488, %v489
        %v491 = vrot.slane %v490, 1
        %v492 = vadd.f32 %v490, %v491
        %v493 = vsel %vm186, %v477, 0.0
        %v494 = vrot.slane %v493, 4
        %v495 = vadd.f32 %v493, %v494
        %v496 = vrot.slane %v495, 2
        %v497 = vadd.f32 %v495, %v496
        %v498 = vrot.slane %v497, 1
        %v499 = vadd.f32 %v497, %v498
        %v500 = vsel %vm186, %v478, 0.0
        %v501 = vrot.slane %v500, 4
        %v502 = vadd.f32 %v500, %v501
        %v503 = vrot.slane %v502, 2
        %v504 = vadd.f32 %v502, %v503
        %v505 = vrot.slane %v504, 1
        %v506 = vadd.f32 %v504, %v505
        %v507 = vsub.f32 %v425, %v485
        %v508 = vsub.f32 %v432, %v485
        %v509 = vsub.f32 %v439, %v492
        %v510 = vsub.f32 %v446, %v492
        %v511 = vsub.f32 %v453, %v499
        %v512 = vsub.f32 %v460, %v499
        %v513 = vsub.f32 %v467, %v506
        %v514 = vsub.f32 %v474, %v506
        %v515 = vmul.f32 %v507, 0.5
        %v516 = vmul.f32 %v508, 0.5
        %v517 = vmul.f32 %v509, 0.5
        %v518 = vmul.f32 %v510, 0.5
        %v519 = vmul.f32 %v511, 0.5
        %v520 = vmul.f32 %v512, 0.5
        %v521 = vmul.f32 %v513, 0.5
        %v522 = vmul.f32 %v514, 0.5
        %v523 = vxor.u32 %v515, 2147483648
        %v524 = vxor.u32 %v516, 2147483648
        %v525 = vxor.u32 %v517, 2147483648
        %v526 = vxor.u32 %v518, 2147483648
        %v527 = vxor.u32 %v519, 2147483648
        %v528 = vxor.u32 %v520, 2147483648
        %v529 = vxor.u32 %v521, 2147483648
        %v530 = vxor.u32 %v522, 2147483648
        %v531 = vmul.f32 %v523, 1.442695
        %v532 = vpow.pop %v531
        %v533 = vmul.f32 %v524, 1.442695
        %v534 = vpow.pop %v533
        %v535 = vmul.f32 %v525, 1.442695
        %v536 = vpow.pop %v535
        %v537 = vmul.f32 %v526, 1.442695
        %v538 = vpow.pop %v537
        %v539 = vmul.f32 %v527, 1.442695
        %v540 = vpow.pop %v539
        %v541 = vmul.f32 %v528, 1.442695
        %v542 = vpow.pop %v541
        %v543 = vmul.f32 %v529, 1.442695
        %v544 = vpow.pop %v543
        %v545 = vmul.f32 %v530, 1.442695
        %v546 = vpow.pop %v545
        %v547 = vadd.f32 %v532, 1.0
        %v548 = vadd.f32 %v534, 1.0
        %v549 = vadd.f32 %v536, 1.0
        %v550 = vadd.f32 %v538, 1.0
        %v551 = vadd.f32 %v540, 1.0
        %v552 = vadd.f32 %v542, 1.0
        %v553 = vadd.f32 %v544, 1.0
        %v554 = vadd.f32 %v546, 1.0
        %v555 = vrcp.pop %v547
        %v556 = vmul.f32 1.0, %v555
        %v557 = vrcp.pop %v548
        %v558 = vmul.f32 1.0, %v557
        %v559 = vrcp.pop %v549
        %v560 = vmul.f32 1.0, %v559
        %v561 = vrcp.pop %v550
        %v562 = vmul.f32 1.0, %v561
        %v563 = vrcp.pop %v551
        %v564 = vmul.f32 1.0, %v563
        %v565 = vrcp.pop %v552
        %v566 = vmul.f32 1.0, %v565
        %v567 = vrcp.pop %v553
        %v568 = vmul.f32 1.0, %v567
        %v569 = vrcp.pop %v554
        %v570 = vmul.f32 1.0, %v569
        %v579 = vcombine.low %v556, %v558
        %v581 = vunpack.c.l.s4 1983009808
        %v582 = vunpack.c.0.s8 %v581
        %v583 = vlaneseq
        %v584 = vshrl.u32 %v583, 7
        %v585 = vsub.s32 %v582, %v584
        %v586 = vrot.slane %v579, %v585
        %v587 = vcombine.low %v560, %v562
        %v589 = vunpack.c.l.s4 1983009808
        %v590 = vunpack.c.0.s8 %v589
        %v591 = vlaneseq
        %v592 = vshrl.u32 %v591, 7
        %v593 = vsub.s32 %v590, %v592
        %v594 = vrot.slane %v587, %v593
        %v595 = vcombine.low %v564, %v566
        %v597 = vunpack.c.l.s4 1983009808
        %v598 = vunpack.c.0.s8 %v597
        %v599 = vlaneseq
        %v600 = vshrl.u32 %v599, 7
        %v601 = vsub.s32 %v598, %v600
        %v602 = vrot.slane %v595, %v601
        %v603 = vcombine.low %v568, %v570
        %v605 = vunpack.c.l.s4 1983009808
        %v606 = vunpack.c.0.s8 %v605
        %v607 = vlaneseq
        %v608 = vshrl.u32 %v607, 7
        %v609 = vsub.s32 %v606, %v608
        %v610 = vrot.slane %v603, %v609
        %v615 = vmul.f32 %v138, %v586
        %v616 = vmul.f32 %v139, %v594
        %v617 = vmul.f32 %v140, %v602
        %v618 = vmul.f32 %v141, %v610
        %619 = vst [vmem:[%s135] sm:$0xf] %v615
        %620 = vst [vmem:[%s135 + $0x4] sm:$0xf] %v616
        %621 = vst [vmem:[%s135 + $0x8] sm:$0xf] %v617
        %622 = vst [vmem:[%s135 + $0xc] sm:$0xf] %v618
        %s623 = sand.u32 %s52, 1
        %s624 = scalar_lea.sflag [#allocation4], %s623
        %s625 = sand.u32 %s52, 1
        %s626 = smul.addr %s625, 16
        %s627 = scalar_lea.vmem [#allocation5], %s626
        // Predicated region
        $region29: #{tpu_custom_call.1} parent=23 // pred_check
          %p628 = pneg %p62
        $region30: #{tpu_custom_call.1} parent=23 // pred_check_branch
          %630 = sbr.rel (%p628) target = $region32
        $region31: #{tpu_custom_call.1} parent=23 // pred_region
          %s631 = smul.u32 4, %s18
          %s633 = ssub.s32 256, 256
          %634 = vsyncadd %s624, %s633
          %s635 = smul.addr %s631, 2
          %s636 = smul.addr %s635, 32
          %s637 = scalar_lea.hbm %s1, %s636
          %s638 = sshll.u32 %s627, 4
          %s639 = int_to_ptr.vmem [resolvable:$true] %s638
          %644 = dma.vmem_to_hbm [thread:$0]  %s639, 256, %s637, %s624, 64, 64, 4
        $region32: #{tpu_custom_call.1} parent=23 // pred_fallthru
          _
      $region24: #{tpu_custom_call.1} parent=5 // pred_fallthru
        _
      %p645 = scmp.le.s32.totalorder 2, %s13
      // Predicated region
      $region33: #{tpu_custom_call.1} parent=5 // pred_check
        %p646 = pneg %p645
      $region34: #{tpu_custom_call.1} parent=5 // pred_check_branch
        %648 = sbr.rel (%p646) target = $region36
      $region35: #{tpu_custom_call.1} parent=5 // pred_region
        %s649 = ssub.s32 %s13, 2
        // Predicated region
        $region37: #{tpu_custom_call.1} parent=35 // pred_check
          %p650 = pneg %p68
        $region38: #{tpu_custom_call.1} parent=35 // pred_check_branch
          %652 = sbr.rel (%p650) target = $region40
        $region39: #{tpu_custom_call.1} parent=35 // pred_region
          %s653 = sand.u32 %s53, 1
          %s654 = scalar_lea.sflag [#allocation4], %s653
          %s655 = sand.u32 %s53, 1
          %s656 = smul.addr %s655, 16
          %s657 = scalar_lea.vmem [#allocation5], %s656
          %658 = dma.done %s654, 256
        $region40: #{tpu_custom_call.1} parent=35 // pred_fallthru
          _
      $region36: #{tpu_custom_call.1} parent=5 // pred_fallthru
        _
    $region6: #{tpu_custom_call.1} parent=1 // loop_footer
      %s17 = sadd.s32 1, %s13
    $region7: #{tpu_custom_call.1} parent=1 // loop_footer_branch
      %12 = sbr.rel target = $region3
    $region8: #{tpu_custom_call.1} parent=1 // loop_exit
      _
    %659 = vsyncpa [#allocation3], 1
    %s660 = scalar_lea.sflag [#allocation3], 1
    %661 = vsyncpa %s660, 1
    %662 = vsyncpa [#allocation4], 1
    %s663 = scalar_lea.sflag [#allocation4], 1
    %664 = vsyncpa %s663, 1

</llo_original>
